<compile_context>
chip_gen: v7x
topology: tpu7x:2x2x1
jax: 0.10.0
libtpu: 0.0.40
codegen_flags: <defaults>
</compile_context>

<pallas_src>
import numpy as np
import jax
import jax.numpy as jnp
from jax.experimental import pallas as pl
from jax.experimental.pallas import tpu as pltpu


def _yolo_decode_kernel(x_ref, scale_ref, offs_ref, o_ref):
    """Decode one block of (B, C+5, G*G) raw predictions.

    x_ref     : VMEM (B, C+5, G*G) raw network outputs (input dtype)
    scale_ref : VMEM (B, C+5, 1)   per-row multiplier
                  rows 0,1 -> stride ; rows 2,3 -> raw anchor w/h ; rows 4+ -> 1
    offs_ref  : VMEM (C+5, G*G)    per-row additive offset (resident across steps)
                  row 0 -> grid_x*stride ; row 1 -> grid_y*stride ; rows 2+ -> 0
    o_ref     : VMEM (B, C+5, G*G) decoded outputs (float32)
    """
    p = x_ref[...].astype(jnp.float32)                       # (B, C5, GG)

    row = jax.lax.broadcasted_iota(jnp.int32, p.shape, 1)    # channel-row index
    is_wh = jnp.logical_and(row >= 2, row < 4)               # w/h rows -> exp path

    # One EUP (exp) pass per element; sigmoid derived from exp(-p).
    t = jnp.exp(jnp.where(is_wh, p, -p))
    dec = jnp.where(is_wh, t, 1.0 / (1.0 + t))

    # Single full-block, lane-dense store: affine per-row scale/offset finishes
    # the decode.
    o_ref[...] = dec * scale_ref[...] + offs_ref[...][None, :, :]


def _largest_divisor_leq(n, cap):
    cap = max(1, min(n, cap))
    for d in range(cap, 0, -1):
        if n % d == 0:
            return d
    return 1


def yolo_layer_multilabel(x, anchors, num_classes, img_dim,
                          target_vmem_bytes=8 << 20):
    """Pallas equivalent of YOLOLayer_multilabel.forward(x, None, img_dim).

    x : (N, A*(C+5), G, G) NCHW conv output (float32 or bf16)
    returns (output: (N, A*G*G, C+5) float32, 0)
    """
    N, ch, G, G2 = x.shape
    assert G == G2
    A = len(anchors)
    C5 = num_classes + 5
    assert ch == A * C5
    GG = G * G
    stride = float(img_dim) / float(G)
    total = N * A

    # ---- host-side constants (shape-dependent only) ------------------------
    anch = np.asarray(anchors, np.float32)                   # (A, 2) in pixels
    scale_a = np.ones((A, C5), np.float32)
    scale_a[:, 0] = stride
    scale_a[:, 1] = stride
    scale_a[:, 2] = anch[:, 0]   # (a_w/stride) * stride == raw anchor width
    scale_a[:, 3] = anch[:, 1]
    scale = jnp.asarray(np.tile(scale_a[None], (N, 1, 1)).reshape(total, C5, 1))

    k = np.arange(GG)
    offs_np = np.zeros((C5, GG), np.float32)
    offs_np[0] = (k % G).astype(np.float32) * stride         # grid_x * stride
    offs_np[1] = (k // G).astype(np.float32) * stride        # grid_y * stride
    offs = jnp.asarray(offs_np)

    # ---- block sizing: fuse slabs, keep >= 2 grid steps for v7x megacore ---
    # Per-slab VMEM footprint accounting for sublane padding of the C+5 axis
    # and the (2x in + 2x out) double buffers BlockSpec pipelining allocates.
    padded_c5 = ((C5 + 7) // 8) * 8
    in_bytes = padded_c5 * GG * np.dtype(x.dtype).itemsize
    out_bytes = padded_c5 * GG * 4
    slab_bytes = 2 * in_bytes + 2 * out_bytes
    cap = max(1, target_vmem_bytes // slab_bytes)
    if total >= 2:
        cap = min(cap, max(1, total // 2))                   # at least 2 grid steps
    bs = _largest_divisor_leq(total, cap)
    grid = (total // bs,)

    # (N, A*(C+5), G, G) -> (N*A, C+5, G*G): pure reshape, no HBM shuffle/cast.
    xr = x.reshape(total, C5, GG)

    out = pl.pallas_call(
        _yolo_decode_kernel,
        out_shape=jax.ShapeDtypeStruct((total, C5, GG), jnp.float32),
        grid=grid,
        in_specs=[
            pl.BlockSpec((bs, C5, GG), lambda i: (i, 0, 0)),   # raw predictions
            pl.BlockSpec((bs, C5, 1), lambda i: (i, 0, 0)),    # per-slab row scales
            pl.BlockSpec((C5, GG), lambda i: (0, 0)),          # resident grid offsets
        ],
        out_specs=pl.BlockSpec((bs, C5, GG), lambda i: (i, 0, 0)),
        compiler_params=pltpu.CompilerParams(
            dimension_semantics=("parallel",)),
    )(xr, scale, offs)

    # Glue: (N*A, C+5, G*G) -> (N, A*G*G, C+5) to match the torch cat/view order.
    out = out.reshape(N, A, C5, GG).transpose(0, 1, 3, 2).reshape(N, A * GG, C5)
    # targets is None -> loss term is the constant 0, as in the reference.
    return out, 0


def _reference(x, anchors, num_classes, img_dim):
    """Pure-numpy port of the PyTorch forward (targets=None) for verification."""
    N, ch, G, _ = x.shape
    A = len(anchors)
    C5 = num_classes + 5
    stride = img_dim / G
    pred = x.reshape(N, A, C5, G, G).transpose(0, 1, 3, 4, 2)          # (N,A,G,G,C5)
    sig = 1.0 / (1.0 + np.exp(-pred))
    grid_x = np.arange(G, dtype=np.float32).reshape(1, 1, 1, G)
    grid_y = np.arange(G, dtype=np.float32).reshape(1, 1, G, 1)
    anc = np.asarray(anchors, np.float32) / stride
    aw = anc[:, 0].reshape(1, A, 1, 1)
    ah = anc[:, 1].reshape(1, A, 1, 1)
    boxes = np.zeros((N, A, G, G, 4), np.float32)
    boxes[..., 0] = sig[..., 0] + grid_x
    boxes[..., 1] = sig[..., 1] + grid_y
    boxes[..., 2] = np.exp(pred[..., 2]) * aw
    boxes[..., 3] = np.exp(pred[..., 3]) * ah
    out = np.concatenate(
        [boxes.reshape(N, -1, 4) * stride,
         sig[..., 4].reshape(N, -1, 1),
         sig[..., 5:].reshape(N, -1, num_classes)], axis=-1)
    return out


if __name__ == "__main__":
    # Small, deterministic configuration.
    N = 2
    num_classes = 4
    anchors = [(10.0, 13.0), (16.0, 30.0), (33.0, 23.0)]   # deterministic "params"
    A = len(anchors)
    G = 16
    img_dim = 320

    key = jax.random.PRNGKey(0)
    x = jax.random.normal(key, (N, A * (num_classes + 5), G, G), dtype=jnp.float32)

    output, loss = yolo_layer_multilabel(x, anchors, num_classes, img_dim)
    output = jax.block_until_ready(output)

    ref = _reference(np.asarray(x), anchors, num_classes, img_dim)
    assert output.shape == (N, A * G * G, num_classes + 5)
    assert loss == 0
    np.testing.assert_allclose(np.asarray(output), ref, rtol=1e-4, atol=1e-4)

    print("KERNEL_OK")
</pallas_src>

<mosaic_0001>
module attributes {stable_mosaic.version = 11 : i64} {
  func.func @_yolo_decode_kernel(%arg0: i32, %arg1: memref<3x9x256xf32, #tpu.memory_space<vmem>>, %arg2: memref<3x9x1xf32, #tpu.memory_space<vmem>>, %arg3: memref<9x256xf32, #tpu.memory_space<vmem>>, %arg4: memref<3x9x256xf32, #tpu.memory_space<vmem>>) attributes {dimension_semantics = [#tpu.dimension_semantics<parallel>], iteration_bounds = array<i64: 2>, scalar_prefetch = 0 : i64, scratch_operands = 0 : i64, tpu.core_type = #tpu.core_type<tc>, window_params = [{transform_indices = @transform_0, window_bounds = array<i64: 3, 9, 256>}, {transform_indices = @transform_1, window_bounds = array<i64: 3, 9, 1>}, {pipeline_mode = #tpu.pipeline_mode<synchronous>, transform_indices = @transform_2, window_bounds = array<i64: 9, 256>}, {transform_indices = @transform_3, window_bounds = array<i64: 3, 9, 256>}]} {
    %c0 = arith.constant 0 : index
    %c0_0 = arith.constant 0 : index
    %c0_1 = arith.constant 0 : index
    %0 = vector.load %arg1[%c0, %c0_0, %c0_1] : memref<3x9x256xf32, #tpu.memory_space<vmem>>, vector<3x9x256xf32>
    %1 = tpu.iota {dimensions = array<i32: 1>} : vector<3x9x256xi32>
    %c2_i32 = arith.constant 2 : i32
    %2 = vector.broadcast %c2_i32 : i32 to vector<3x9x256xi32>
    %3 = arith.cmpi sge, %1, %2 : vector<3x9x256xi32>
    %c4_i32 = arith.constant 4 : i32
    %4 = vector.broadcast %c4_i32 : i32 to vector<3x9x256xi32>
    %5 = arith.cmpi slt, %1, %4 : vector<3x9x256xi32>
    %6 = arith.andi %3, %5 : vector<3x9x256xi1>
    %cst = arith.constant 0.000000e+00 : f32
    %7 = vector.broadcast %cst : f32 to vector<3x9x256xf32>
    %8 = arith.subf %7, %0 : vector<3x9x256xf32>
    %9 = arith.select %6, %0, %8 : vector<3x9x256xi1>, vector<3x9x256xf32>
    %10 = math.exp %9 : vector<3x9x256xf32>
    %cst_2 = arith.constant 1.000000e+00 : f32
    %11 = vector.broadcast %cst_2 : f32 to vector<3x9x256xf32>
    %12 = arith.addf %11, %10 : vector<3x9x256xf32>
    %cst_3 = arith.constant 1.000000e+00 : f32
    %13 = vector.broadcast %cst_3 : f32 to vector<3x9x256xf32>
    %14 = arith.divf %13, %12 : vector<3x9x256xf32>
    %15 = arith.select %6, %10, %14 : vector<3x9x256xi1>, vector<3x9x256xf32>
    %c0_4 = arith.constant 0 : index
    %c0_5 = arith.constant 0 : index
    %c0_6 = arith.constant 0 : index
    %16 = vector.load %arg2[%c0_4, %c0_5, %c0_6] : memref<3x9x1xf32, #tpu.memory_space<vmem>>, vector<3x9x1xf32>
    %17 = vector.broadcast %16 : vector<3x9x1xf32> to vector<3x9x256xf32>
    %18 = arith.mulf %15, %17 : vector<3x9x256xf32>
    %c0_7 = arith.constant 0 : index
    %c0_8 = arith.constant 0 : index
    %19 = vector.load %arg3[%c0_7, %c0_8] : memref<9x256xf32, #tpu.memory_space<vmem>>, vector<9x256xf32>
    %20 = vector.shape_cast %19 : vector<9x256xf32> to vector<1x9x256xf32>
    %21 = vector.broadcast %20 : vector<1x9x256xf32> to vector<3x9x256xf32>
    %22 = arith.addf %18, %21 : vector<3x9x256xf32>
    %c0_9 = arith.constant 0 : index
    %c0_10 = arith.constant 0 : index
    %c0_11 = arith.constant 0 : index
    %23 = vector.load %arg4[%c0_9, %c0_10, %c0_11] : memref<3x9x256xf32, #tpu.memory_space<vmem>>, vector<3x9x256xf32>
    tpu.vector_store %arg4[%c0_9, %c0_10, %c0_11], %22 {strides = array<i32>} : memref<3x9x256xf32, #tpu.memory_space<vmem>>, vector<3x9x256xf32>,
    return
  }
  func.func @transform_0(%arg0: i32) -> (i32, i32, i32) {
    %c0_i32 = arith.constant 0 : i32
    %c0_i32_0 = arith.constant 0 : i32
    %c0_i32_1 = arith.constant 0 : i32
    return %arg0, %c0_i32, %c0_i32_0 : i32, i32, i32
  }
  func.func @transform_1(%arg0: i32) -> (i32, i32, i32) {
    %c0_i32 = arith.constant 0 : i32
    %c0_i32_0 = arith.constant 0 : i32
    %c0_i32_1 = arith.constant 0 : i32
    return %arg0, %c0_i32, %c0_i32_0 : i32, i32, i32
  }
  func.func @transform_2(%arg0: i32) -> (i32, i32) {
    %c0_i32 = arith.constant 0 : i32
    %c0_i32_0 = arith.constant 0 : i32
    %c0_i32_1 = arith.constant 0 : i32
    return %c0_i32, %c0_i32_0 : i32, i32
  }
  func.func @transform_3(%arg0: i32) -> (i32, i32, i32) {
    %c0_i32 = arith.constant 0 : i32
    %c0_i32_0 = arith.constant 0 : i32
    %c0_i32_1 = arith.constant 0 : i32
    return %arg0, %c0_i32, %c0_i32_0 : i32, i32, i32
  }
}

</mosaic_0001>

<llo_original>
// kernel: tpu_custom_call.1
$region0: #{tpu_custom_call.1}
  #allocation0 [shape = 'u32[]', space=smem, size = 0x4, offset = 0x4, fixed_abs, tag = 'smem constant byte address 0x4 - core index']
  #allocation1 [shape = 'u32[144,128]{1,0:T(1,128)}', space=vmem, size = 0x12000, scoped, tag = 'internal scratch']
  %s0 = inlined_call_operand.vmem [shape: f32[6,9,256], index: 0, kind: input, shape index: {}]
  %s1 = inlined_call_operand.vmem [shape: f32[6,9,1], index: 1, kind: input, shape index: {}]
  %s2 = inlined_call_operand.vmem [shape: f32[9,256], index: 2, kind: input, shape index: {}]
  %s3 = inlined_call_operand.vmem [shape: f32[6,9,256], index: 3, kind: output, shape index: {}]
  %s4 = sld [smem:[#allocation0]]
  $region45: #{tpu_custom_call.1} parent=0
    _
  %s6 = ssub.s32 1, %s4
  %s7 = scalar_select 0, %s6, %s4
  loop: start=0, step=1, limit=4
  $region2: #{tpu_custom_call.1} parent=0 // loop_pre_header
    _
  $region3: #{tpu_custom_call.1} parent=0 // loop_header
    %s9 = sphi 0, %s13
    %p10 = scmp.ge.s32.totalorder %s9, 4
    %s19 = sphi 0, %s21
    %s22 = sphi 0, %s19
    %s23 = sphi 0, %s22
    %s39 = sphi 0, %s23
    %s45 = sphi 0, %s47
    %s48 = sphi 0, %s45
    %s49 = sphi 0, %s48
    %s65 = sphi 0, %s49
    %s69 = sphi 0, %s69
    %s71 = sphi 0, %s69
    %s72 = sphi 0, %s71
    %s86 = sphi 0, %s72
    %s92 = sphi 0, %s94
    %s95 = sphi 0, %s92
    %s96 = sphi 0, %s95
    %s112 = sphi 0, %s96
  $region4: #{tpu_custom_call.1} parent=0 // loop_header_branch
    %12 = sbr.rel (%p10) target = $region8
  $region5: #{tpu_custom_call.1} parent=0 // loop_body
    %s14 = ssub.s32 %s9, 1
    %s15 = ssub.s32 %s9, 2
    %s16 = sadd.s32 %s9, 1
    %s17 = ssub.s32 %s9, %s16
    %p18 = scmp.eq.s32.totalorder %s17, 0
    %s20 = sadd.s32 %s19, 1
    %s21 = scalar_select %p18, %s19, %s20
    %p24 = pneg %p18
    %p25 = scmp.eq.s32.totalorder %s9, 1
    %p26 = por %p24, %p25
    %p27 = scmp.ne.s32.totalorder %s19, %s22
    %p28 = scmp.eq.s32.totalorder %s9, 0
    %p29 = por %p27, %p28
    %p30 = scmp.ne.s32.totalorder %s19, %s22
    %p31 = scmp.eq.s32.totalorder %s14, 1
    %p32 = por %p30, %p31
    %p33 = scmp.ne.s32.totalorder %s22, %s23
    %p34 = scmp.eq.s32.totalorder %s14, 0
    %p35 = por %p33, %p34
    %p36 = scmp.ne.s32.totalorder %s22, %s23
    %p37 = scmp.eq.s32.totalorder %s15, 1
    %p38 = por %p36, %p37
    %p40 = scmp.ne.s32.totalorder %s23, %s39
    %p41 = scmp.eq.s32.totalorder %s15, 0
    %p42 = por %p40, %p41
    %s43 = ssub.s32 %s9, %s16
    %p44 = scmp.eq.s32.totalorder %s43, 0
    %s46 = sadd.s32 %s45, 1
    %s47 = scalar_select %p44, %s45, %s46
    %p50 = pneg %p44
    %p51 = scmp.eq.s32.totalorder %s9, 1
    %p52 = por %p50, %p51
    %p53 = scmp.ne.s32.totalorder %s45, %s48
    %p54 = scmp.eq.s32.totalorder %s9, 0
    %p55 = por %p53, %p54
    %p56 = scmp.ne.s32.totalorder %s45, %s48
    %p57 = scmp.eq.s32.totalorder %s14, 1
    %p58 = por %p56, %p57
    %p59 = scmp.ne.s32.totalorder %s48, %s49
    %p60 = scmp.eq.s32.totalorder %s14, 0
    %p61 = por %p59, %p60
    %p62 = scmp.ne.s32.totalorder %s48, %s49
    %p63 = scmp.eq.s32.totalorder %s15, 1
    %p64 = por %p62, %p63
    %p66 = scmp.ne.s32.totalorder %s49, %s65
    %p67 = scmp.eq.s32.totalorder %s15, 0
    %p68 = por %p66, %p67
    %s70 = sadd.s32 %s69, 1
    %p73 = scmp.eq.s32.totalorder %s9, 1
    %p74 = scmp.ne.s32.totalorder %s69, %s71
    %p75 = scmp.eq.s32.totalorder %s9, 0
    %p76 = por %p74, %p75
    %p77 = scmp.ne.s32.totalorder %s69, %s71
    %p78 = scmp.eq.s32.totalorder %s14, 1
    %p79 = por %p77, %p78
    %p80 = scmp.ne.s32.totalorder %s71, %s72
    %p81 = scmp.eq.s32.totalorder %s14, 0
    %p82 = por %p80, %p81
    %p83 = scmp.ne.s32.totalorder %s71, %s72
    %p84 = scmp.eq.s32.totalorder %s15, 1
    %p85 = por %p83, %p84
    %p87 = scmp.ne.s32.totalorder %s72, %s86
    %p88 = scmp.eq.s32.totalorder %s15, 0
    %p89 = por %p87, %p88
    %s90 = ssub.s32 %s9, %s16
    %p91 = scmp.eq.s32.totalorder %s90, 0
    %s93 = sadd.s32 %s92, 1
    %s94 = scalar_select %p91, %s92, %s93
    %p97 = pneg %p91
    %p98 = scmp.eq.s32.totalorder %s9, 1
    %p99 = por %p97, %p98
    %p100 = scmp.ne.s32.totalorder %s92, %s95
    %p101 = scmp.eq.s32.totalorder %s9, 0
    %p102 = por %p100, %p101
    %p103 = scmp.ne.s32.totalorder %s92, %s95
    %p104 = scmp.eq.s32.totalorder %s14, 1
    %p105 = por %p103, %p104
    %p106 = scmp.ne.s32.totalorder %s95, %s96
    %p107 = scmp.eq.s32.totalorder %s14, 0
    %p108 = por %p106, %p107
    %p109 = scmp.ne.s32.totalorder %s95, %s96
    %p110 = scmp.eq.s32.totalorder %s15, 1
    %p111 = por %p109, %p110
    %p113 = scmp.ne.s32.totalorder %s96, %s112
    %p114 = scmp.eq.s32.totalorder %s15, 0
    %p115 = por %p113, %p114
    %p116 = scmp.le.s32.totalorder 1, %s9
    %p117 = scmp.lt.s32.totalorder %s9, 3
    %p118 = pnand %p116, %p117
    %p119 = pneg %p118
    // Predicated region
    $region9: #{tpu_custom_call.1} parent=5 // pred_check
      _
    $region10: #{tpu_custom_call.1} parent=5 // pred_check_branch
      %121 = sbr.rel (%p118) target = $region12
    $region11: #{tpu_custom_call.1} parent=5 // pred_region
      %s122 = ssub.s32 %s9, 1
      // Predicated region
      $region13: #{tpu_custom_call.1} parent=11 // pred_check
        %p123 = pneg %p82
      $region14: #{tpu_custom_call.1} parent=11 // pred_check_branch
        %125 = sbr.rel (%p123) target = $region16
      $region15: #{tpu_custom_call.1} parent=11 // pred_region
        _
      $region16: #{tpu_custom_call.1} parent=11 // pred_fallthru
        _
    $region12: #{tpu_custom_call.1} parent=5 // pred_fallthru
      _
    %p126 = scmp.lt.s32.totalorder %s9, 2
    // Predicated region
    $region17: #{tpu_custom_call.1} parent=5 // pred_check
      %p127 = pneg %p126
    $region18: #{tpu_custom_call.1} parent=5 // pred_check_branch
      %129 = sbr.rel (%p127) target = $region20
    $region19: #{tpu_custom_call.1} parent=5 // pred_region
      // Predicated region
      $region21: #{tpu_custom_call.1} parent=19 // pred_check
        %p130 = pneg %p29
      $region22: #{tpu_custom_call.1} parent=19 // pred_check_branch
        %132 = sbr.rel (%p130) target = $region24
      $region23: #{tpu_custom_call.1} parent=19 // pred_region
        %s133 = smul.u32 3, %s9
        %p134 = scmp.lt.s32.totalorder %s133, 5
        %s135 = scalar_select %p134, %s133, 5
        %s136 = smul.addr %s135, 4
        %s137 = smul.addr %s136, 8
        %s138 = scalar_lea.vmem %s0, %s137
        %s139 = smul.u32 3, %s9
      $region24: #{tpu_custom_call.1} parent=19 // pred_fallthru
        _
      // Predicated region
      $region25: #{tpu_custom_call.1} parent=19 // pred_check
        %p140 = pneg %p55
      $region26: #{tpu_custom_call.1} parent=19 // pred_check_branch
        %142 = sbr.rel (%p140) target = $region28
      $region27: #{tpu_custom_call.1} parent=19 // pred_region
        %s143 = smul.u32 3, %s9
        %p144 = scmp.lt.s32.totalorder %s143, 5
        %s145 = scalar_select %p144, %s143, 5
        %s146 = smul.addr %s145, 2
        %s147 = smul.addr %s146, 8
        %s148 = scalar_lea.vmem %s1, %s147
        %s149 = smul.u32 3, %s9
      $region28: #{tpu_custom_call.1} parent=19 // pred_fallthru
        _
    $region20: #{tpu_custom_call.1} parent=5 // pred_fallthru
      _
    %p150 = scmp.le.s32.totalorder 1, %s9
    %p151 = scmp.lt.s32.totalorder %s9, 3
    %p152 = pnand %p150, %p151
    %p153 = pneg %p152
    // Predicated region
    $region29: #{tpu_custom_call.1} parent=5 // pred_check
      _
    $region30: #{tpu_custom_call.1} parent=5 // pred_check_branch
      %155 = sbr.rel (%p152) target = $region32
    $region31: #{tpu_custom_call.1} parent=5 // pred_region
      %s156 = ssub.s32 %s9, 1
      %s157 = smul.u32 3, %s14
      %p158 = scmp.lt.s32.totalorder %s157, 5
      %s159 = scalar_select %p158, %s157, 5
      %s160 = smul.addr %s159, 4
      %s161 = smul.addr %s160, 8
      %s162 = scalar_lea.vmem %s0, %s161
      %p163 = pneg %p35
      %p164 = pneg %p32
      %s165 = smul.u32 3, %s14
      %p166 = scmp.lt.s32.totalorder %s165, 5
      %s167 = scalar_select %p166, %s165, 5
      %s168 = smul.addr %s167, 2
      %s169 = smul.addr %s168, 8
      %s170 = scalar_lea.vmem %s1, %s169
      %p171 = pneg %p61
      %p172 = pneg %p58
      %p173 = pneg %p82
      %p174 = pneg %p79
      %p175 = pneg %p108
      %p176 = pneg %p105
      %s177 = smul.u32 3, %s14
      %p178 = scmp.lt.s32.totalorder %s177, 5
      %s179 = scalar_select %p178, %s177, 5
      %s180 = smul.addr %s179, 4
      %s181 = smul.addr %s180, 8
      %s182 = scalar_lea.vmem %s3, %s181
      %s183 = smul.u32 3, %s14
      %p184 = scmp.lt.s32.totalorder %s183, 5
      %s185 = scalar_select %p184, %s183, 5
      %s186 = smul.addr %s185, 4
      %s187 = smul.addr %s186, 8
      %s188 = scalar_lea.vmem %s0, %s187
      %s189 = smul.u32 3, %s14
      %s190 = smul.u32 3, %s14
      %p191 = scmp.lt.s32.totalorder %s190, 5
      %s192 = scalar_select %p191, %s190, 5
      %s193 = smul.addr %s192, 2
      %s194 = smul.addr %s193, 8
      %s195 = scalar_lea.vmem %s1, %s194
      %s196 = smul.u32 3, %s14
      %s197 = smul.u32 3, %s14
      %p198 = scmp.lt.s32.totalorder %s197, 5
      %s199 = scalar_select %p198, %s197, 5
      %s200 = smul.addr %s199, 4
      %s201 = smul.addr %s200, 8
      %s202 = scalar_lea.vmem %s3, %s201
      %s203 = smul.u32 3, %s14
      %v204 = vld [vmem:[%s188] sm:$0xff]
      %v205 = vld [vmem:[%s188 + $0x8] sm:$0xff]
      %v206 = vld [vmem:[%s188 + $0x10] sm:$0x1]
      %v207 = vld [vmem:[%s188 + $0x18] sm:$0x1]
      %v208 = vld [vmem:[%s188 + $0x20] sm:$0xff]
      %v209 = vld [vmem:[%s188 + $0x28] sm:$0xff]
      %v210 = vld [vmem:[%s188 + $0x30] sm:$0x1]
      %v211 = vld [vmem:[%s188 + $0x38] sm:$0x1]
      %v212 = vld [vmem:[%s188 + $0x40] sm:$0xff]
      %v213 = vld [vmem:[%s188 + $0x48] sm:$0xff]
      %v214 = vld [vmem:[%s188 + $0x50] sm:$0x1]
      %v215 = vld [vmem:[%s188 + $0x58] sm:$0x1]
      %v216 = vlaneseq
      %v217 = vshrl.u32 %v216, 7
      %v218 = vadd.s32 %v217, 8
      %vm219 = vcmp.ge.s32.totalorder %v217, 2
      %vm220 = vcmp.ge.s32.totalorder %v218, 2
      %vm221 = vcmp.lt.s32.totalorder %v217, 4
      %vm222 = vcmp.lt.s32.totalorder %v218, 4
      %vm223 = vmand %vm219, %vm221
      %vm224 = vmand %vm220, %vm222
      %v225 = vsub.f32 0.0, %v204
      %v226 = vsub.f32 0.0, %v205
      %v227 = vsub.f32 0.0, %v206
      %v228 = vsub.f32 0.0, %v207
      %v229 = vsub.f32 0.0, %v208
      %v230 = vsub.f32 0.0, %v209
      %v231 = vsub.f32 0.0, %v210
      %v232 = vsub.f32 0.0, %v211
      %v233 = vsub.f32 0.0, %v212
      %v234 = vsub.f32 0.0, %v213
      %v235 = vsub.f32 0.0, %v214
      %v236 = vsub.f32 0.0, %v215
      %v237 = vsel %vm223, %v204, %v225
      %v238 = vsel %vm223, %v205, %v226
      %v239 = vsel %vm224, %v206, %v227
      %v240 = vsel %vm224, %v207, %v228
      %v241 = vsel %vm223, %v208, %v229
      %v242 = vsel %vm223, %v209, %v230
      %v243 = vsel %vm224, %v210, %v231
      %v244 = vsel %vm224, %v211, %v232
      %v245 = vsel %vm223, %v212, %v233
      %v246 = vsel %vm223, %v213, %v234
      %v247 = vsel %vm224, %v214, %v235
      %v248 = vsel %vm224, %v215, %v236
      %v249 = vmul.f32 %v237, 1.442695
      %v250 = vpow.pop %v249
      %v251 = vmul.f32 %v238, 1.442695
      %v252 = vpow.pop %v251
      %v253 = vmul.f32 %v239, 1.442695
      %v254 = vpow.pop %v253
      %v255 = vmul.f32 %v240, 1.442695
      %v256 = vpow.pop %v255
      %v257 = vmul.f32 %v241, 1.442695
      %v258 = vpow.pop %v257
      %v259 = vmul.f32 %v242, 1.442695
      %v260 = vpow.pop %v259
      %v261 = vmul.f32 %v243, 1.442695
      %v262 = vpow.pop %v261
      %v263 = vmul.f32 %v244, 1.442695
      %v264 = vpow.pop %v263
      %v265 = vmul.f32 %v245, 1.442695
      %v266 = vpow.pop %v265
      %v267 = vmul.f32 %v246, 1.442695
      %v268 = vpow.pop %v267
      %v269 = vmul.f32 %v247, 1.442695
      %v270 = vpow.pop %v269
      %v271 = vmul.f32 %v248, 1.442695
      %v272 = vpow.pop %v271
      %v273 = vadd.f32 %v250, 1.0
      %v274 = vadd.f32 %v252, 1.0
      %v275 = vadd.f32 %v254, 1.0
      %v276 = vadd.f32 %v256, 1.0
      %v277 = vadd.f32 %v258, 1.0
      %v278 = vadd.f32 %v260, 1.0
      %v279 = vadd.f32 %v262, 1.0
      %v280 = vadd.f32 %v264, 1.0
      %v281 = vadd.f32 %v266, 1.0
      %v282 = vadd.f32 %v268, 1.0
      %v283 = vadd.f32 %v270, 1.0
      %v284 = vadd.f32 %v272, 1.0
      %v285 = vrcp.pop %v273
      %v286 = vmul.f32 1.0, %v285
      %v287 = vrcp.pop %v274
      %v288 = vmul.f32 1.0, %v287
      %v289 = vrcp.pop %v275
      %v290 = vmul.f32 1.0, %v289
      %v291 = vrcp.pop %v276
      %v292 = vmul.f32 1.0, %v291
      %v293 = vrcp.pop %v277
      %v294 = vmul.f32 1.0, %v293
      %v295 = vrcp.pop %v278
      %v296 = vmul.f32 1.0, %v295
      %v297 = vrcp.pop %v279
      %v298 = vmul.f32 1.0, %v297
      %v299 = vrcp.pop %v280
      %v300 = vmul.f32 1.0, %v299
      %v301 = vrcp.pop %v281
      %v302 = vmul.f32 1.0, %v301
      %v303 = vrcp.pop %v282
      %v304 = vmul.f32 1.0, %v303
      %v305 = vrcp.pop %v283
      %v306 = vmul.f32 1.0, %v305
      %v307 = vrcp.pop %v284
      %v308 = vmul.f32 1.0, %v307
      %v309 = vsel %vm223, %v250, %v286
      %v310 = vsel %vm223, %v252, %v288
      %v311 = vsel %vm224, %v254, %v290
      %v312 = vsel %vm224, %v256, %v292
      %v313 = vsel %vm223, %v258, %v294
      %v314 = vsel %vm223, %v260, %v296
      %v315 = vsel %vm224, %v262, %v298
      %v316 = vsel %vm224, %v264, %v300
      %v317 = vsel %vm223, %v266, %v302
      %v318 = vsel %vm223, %v268, %v304
      %v319 = vsel %vm224, %v270, %v306
      %v320 = vsel %vm224, %v272, %v308
      %v321 = vld [vmem:[%s195] sm:$0xff]
      %v322 = vld [vmem:[%s195 + $0x8] sm:$0x1]
      %v323 = vld [vmem:[%s195 + $0x10] sm:$0xff]
      %v324 = vld [vmem:[%s195 + $0x18] sm:$0x1]
      %v325 = vld [vmem:[%s195 + $0x20] sm:$0xff]
      %v326 = vld [vmem:[%s195 + $0x28] sm:$0x1]
      %328 = vset.pattern.permute.xlu0 0
      %329 = vperm.xlu0 %328, %v321
      %v330 = vpop.permute.xlu0 %329
      %333 = vset.pattern.permute.xlu0 0
      %334 = vperm.xlu0 %333, %v322
      %v335 = vpop.permute.xlu0 %334
      %338 = vset.pattern.permute.xlu0 0
      %339 = vperm.xlu0 %338, %v323
      %v340 = vpop.permute.xlu0 %339
      %343 = vset.pattern.permute.xlu0 0
      %344 = vperm.xlu0 %343, %v324
      %v345 = vpop.permute.xlu0 %344
      %348 = vset.pattern.permute.xlu0 0
      %349 = vperm.xlu0 %348, %v325
      %v350 = vpop.permute.xlu0 %349
      %353 = vset.pattern.permute.xlu0 0
      %354 = vperm.xlu0 %353, %v326
      %v355 = vpop.permute.xlu0 %354
      %v357 = vmul.f32 %v309, %v330
      %v358 = vmul.f32 %v310, %v330
      %v359 = vmul.f32 %v311, %v335
      %v360 = vmul.f32 %v312, %v335
      %v361 = vmul.f32 %v313, %v340
      %v362 = vmul.f32 %v314, %v340
      %v363 = vmul.f32 %v315, %v345
      %v364 = vmul.f32 %v316, %v345
      %v365 = vmul.f32 %v317, %v350
      %v366 = vmul.f32 %v318, %v350
      %v367 = vmul.f32 %v319, %v355
      %v368 = vmul.f32 %v320, %v355
      %v369 = vld [vmem:[%s2] sm:$0xff]
      %v370 = vld [vmem:[%s2 + $0x8] sm:$0xff]
      %v371 = vld [vmem:[%s2 + $0x10] sm:$0x1]
      %v372 = vld [vmem:[%s2 + $0x18] sm:$0x1]
      %v373 = vadd.f32 %v357, %v369
      %v374 = vadd.f32 %v358, %v370
      %v375 = vadd.f32 %v359, %v371
      %v376 = vadd.f32 %v360, %v372
      %v377 = vadd.f32 %v361, %v369
      %v378 = vadd.f32 %v362, %v370
      %v379 = vadd.f32 %v363, %v371
      %v380 = vadd.f32 %v364, %v372
      %v381 = vadd.f32 %v365, %v369
      %v382 = vadd.f32 %v366, %v370
      %v383 = vadd.f32 %v367, %v371
      %v384 = vadd.f32 %v368, %v372
      %385 = vst [vmem:[%s202] sm:$0xff] %v373
      %386 = vst [vmem:[%s202 + $0x8] sm:$0xff] %v374
      %387 = vst [vmem:[%s202 + $0x10] sm:$0x1] %v375
      %388 = vst [vmem:[%s202 + $0x18] sm:$0x1] %v376
      %389 = vst [vmem:[%s202 + $0x20] sm:$0xff] %v377
      %390 = vst [vmem:[%s202 + $0x28] sm:$0xff] %v378
      %391 = vst [vmem:[%s202 + $0x30] sm:$0x1] %v379
      %392 = vst [vmem:[%s202 + $0x38] sm:$0x1] %v380
      %393 = vst [vmem:[%s202 + $0x40] sm:$0xff] %v381
      %394 = vst [vmem:[%s202 + $0x48] sm:$0xff] %v382
      %395 = vst [vmem:[%s202 + $0x50] sm:$0x1] %v383
      %396 = vst [vmem:[%s202 + $0x58] sm:$0x1] %v384
      %s397 = smul.u32 3, %s14
      %p398 = scmp.lt.s32.totalorder %s397, 5
      %s399 = scalar_select %p398, %s397, 5
      %s400 = smul.addr %s399, 4
      %s401 = smul.addr %s400, 8
      %s402 = scalar_lea.vmem %s3, %s401
      // Predicated region
      $region33: #{tpu_custom_call.1} parent=31 // pred_check
        %p403 = pneg %p105
      $region34: #{tpu_custom_call.1} parent=31 // pred_check_branch
        %405 = sbr.rel (%p403) target = $region36
      $region35: #{tpu_custom_call.1} parent=31 // pred_region
        %s406 = smul.u32 3, %s14
      $region36: #{tpu_custom_call.1} parent=31 // pred_fallthru
        _
    $region32: #{tpu_custom_call.1} parent=5 // pred_fallthru
      _
    %p407 = scmp.le.s32.totalorder 2, %s9
    // Predicated region
    $region37: #{tpu_custom_call.1} parent=5 // pred_check
      %p408 = pneg %p407
    $region38: #{tpu_custom_call.1} parent=5 // pred_check_branch
      %410 = sbr.rel (%p408) target = $region40
    $region39: #{tpu_custom_call.1} parent=5 // pred_region
      %s411 = ssub.s32 %s9, 2
      // Predicated region
      $region41: #{tpu_custom_call.1} parent=39 // pred_check
        %p412 = pneg %p111
      $region42: #{tpu_custom_call.1} parent=39 // pred_check_branch
        %414 = sbr.rel (%p412) target = $region44
      $region43: #{tpu_custom_call.1} parent=39 // pred_region
        %s415 = smul.u32 3, %s15
        %p416 = scmp.lt.s32.totalorder %s415, 5
        %s417 = scalar_select %p416, %s415, 5
        %s418 = smul.addr %s417, 4
        %s419 = smul.addr %s418, 8
        %s420 = scalar_lea.vmem %s3, %s419
      $region44: #{tpu_custom_call.1} parent=39 // pred_fallthru
        _
    $region40: #{tpu_custom_call.1} parent=5 // pred_fallthru
      _
  $region6: #{tpu_custom_call.1} parent=0 // loop_footer
    %s13 = sadd.s32 1, %s9
  $region7: #{tpu_custom_call.1} parent=0 // loop_footer_branch
    %8 = sbr.rel target = $region3
  $region8: #{tpu_custom_call.1} parent=0 // loop_exit
    _

</llo_original>
